<compile_context>
chip_gen: v5e
topology: v5e:2x2
jax: 0.10.0
libtpu: 0.0.40
codegen_flags: <defaults>
</compile_context>

<pallas_src>
import functools

import jax
import jax.numpy as jnp
from jax.experimental import pallas as pl
from jax.experimental.pallas import tpu as pltpu


LN_EPS = 1e-5
N_POLICY = 5
HEAD_N = 128  # lane-dense fused-head / output width


def _round_up(x, m):
    return ((x + m - 1) // m) * m


def _layernorm(h, gamma, beta):
    # f32 math; reuse the centered tensor for both variance and normalization.
    mean = jnp.mean(h, axis=-1, keepdims=True)
    centered = h - mean
    var = jnp.mean(centered * centered, axis=-1, keepdims=True)
    return centered * jax.lax.rsqrt(var + LN_EPS) * gamma + beta


def _gelu_exact(x):
    # nn.GELU() default is the exact erf formulation.
    return 0.5 * x * (1.0 + jax.lax.erf(x * (1.0 / jnp.sqrt(2.0).astype(x.dtype))))


def policy_critic_kernel(
    x_ref,      # (TILE_B, in_dim)   bf16
    w1_ref,     # (in_dim, hidden)   bf16
    w2_ref,     # (hidden, hidden)   bf16
    wh_ref,     # (hidden, HEAD_N)   bf16  (fused policy+critic head, zero padded)
    vecs_ref,   # (8, hidden)        f32   rows: b1,g1,be1,b2,g2,be2,0,0
    bh_ref,     # (1, HEAD_N)        f32   fused head bias, zero padded
    out_ref,    # (TILE_B, HEAD_N)   f32   cols 0:5 logits, 5 vmean, 6 vstd
    *,
    critics: int,
):
    x = x_ref[...]

    b1, g1, be1 = vecs_ref[0:1, :], vecs_ref[1:2, :], vecs_ref[2:3, :]
    b2, g2, be2 = vecs_ref[3:4, :], vecs_ref[4:5, :], vecs_ref[5:6, :]

    # --- shared block 1: Linear -> LayerNorm -> GELU -> (Dropout = id) ---
    h = jnp.dot(x, w1_ref[...], preferred_element_type=jnp.float32) + b1
    h = _layernorm(h, g1, be1)
    h = _gelu_exact(h)

    # --- shared block 2 ---
    h = jnp.dot(h.astype(jnp.bfloat16), w2_ref[...],
                preferred_element_type=jnp.float32) + b2
    h = _layernorm(h, g2, be2)
    h = _gelu_exact(h)

    # --- fused policy + critic heads: one lane-dense MXU push ---
    head = jnp.dot(h.astype(jnp.bfloat16), wh_ref[...],
                   preferred_element_type=jnp.float32) + bh_ref[...]

    lane = jax.lax.broadcasted_iota(jnp.int32, head.shape, 1)
    vmask = (lane >= N_POLICY) & (lane < N_POLICY + critics)

    # critic mean / unbiased std over the critic lanes (masked lane reduce;
    # avoids sub-128 minor-dim slicing).
    vsum = jnp.sum(jnp.where(vmask, head, 0.0), axis=-1, keepdims=True)
    vmean = vsum * (1.0 / critics)
    centered = jnp.where(vmask, head - vmean, 0.0)
    # torch.std default: unbiased (ddof = 1). critics >= 2 asserted in the wrapper.
    vvar = jnp.sum(centered * centered, axis=-1, keepdims=True) * (1.0 / (critics - 1))
    vstd = jnp.sqrt(vvar)

    # assemble lane-dense output slab
    slab = jnp.where(lane < N_POLICY, jnp.clip(head, -10.0, 10.0), 0.0)
    slab = jnp.where(lane == N_POLICY, vmean, slab)
    slab = jnp.where(lane == N_POLICY + 1, vstd, slab)
    out_ref[...] = slab


@functools.partial(jax.jit, static_argnames=("critics", "tile_b"))
def policy_critic_forward(x, params, critics=2, tile_b=512):
    """x: (B, in_dim) float32. Returns (logits (B, 5), vmean (B,), vstd (B,))."""
    assert critics >= 2, "unbiased std needs critics >= 2 (torch.std would NaN)"
    assert N_POLICY + critics + 2 <= HEAD_N

    B, in_dim = x.shape
    hidden = params["w1"].shape[1]

    # --- batch tiling: pad B up, pick a sublane-aligned tile ---
    tb = min(tile_b, _round_up(B, 8))
    B_pad = _round_up(B, tb)
    x_pad = jnp.pad(x, ((0, B_pad - B), (0, 0)))

    # --- pack the six (1, hidden) vectors into one (8, hidden) tile ---
    zeros_h = jnp.zeros((hidden,), jnp.float32)
    vecs = jnp.stack(
        [
            params["b1"].reshape(hidden),
            params["g1"].reshape(hidden),
            params["be1"].reshape(hidden),
            params["b2"].reshape(hidden),
            params["g2"].reshape(hidden),
            params["be2"].reshape(hidden),
            zeros_h,
            zeros_h,
        ],
        axis=0,
    )

    # --- fuse policy + critic heads into one lane-dense (hidden, 128) weight ---
    wh = jnp.zeros((hidden, HEAD_N), jnp.float32)
    wh = wh.at[:, :N_POLICY].set(params["wp"])
    wh = wh.at[:, N_POLICY:N_POLICY + critics].set(params["wv"])
    bh = jnp.zeros((1, HEAD_N), jnp.float32)
    bh = bh.at[:, :N_POLICY].set(params["bp"])
    bh = bh.at[:, N_POLICY:N_POLICY + critics].set(params["bv"])

    # --- bf16 MXU operands, f32 accumulation inside the kernel ---
    x_bf = x_pad.astype(jnp.bfloat16)
    w1_bf = params["w1"].astype(jnp.bfloat16)
    w2_bf = params["w2"].astype(jnp.bfloat16)
    wh_bf = wh.astype(jnp.bfloat16)

    grid = (B_pad // tb,)
    out = pl.pallas_call(
        functools.partial(policy_critic_kernel, critics=critics),
        out_shape=jax.ShapeDtypeStruct((B_pad, HEAD_N), jnp.float32),
        grid_spec=pltpu.PrefetchScalarGridSpec(
            num_scalar_prefetch=0,
            grid=grid,
            in_specs=[
                pl.BlockSpec((tb, in_dim), lambda i: (i, 0)),       # x tile (pipelined)
                pl.BlockSpec((in_dim, hidden), lambda i: (0, 0)),   # W1 resident
                pl.BlockSpec((hidden, hidden), lambda i: (0, 0)),   # W2 resident
                pl.BlockSpec((hidden, HEAD_N), lambda i: (0, 0)),   # fused head W resident
                pl.BlockSpec((8, hidden), lambda i: (0, 0)),        # packed b/gamma/beta
                pl.BlockSpec((1, HEAD_N), lambda i: (0, 0)),        # fused head bias
            ],
            out_specs=pl.BlockSpec((tb, HEAD_N), lambda i: (i, 0)),
        ),
        compiler_params=pltpu.CompilerParams(
            dimension_semantics=("parallel",),
        ),
    )(x_bf, w1_bf, w2_bf, wh_bf, vecs, bh)

    logits = out[:B, :N_POLICY]
    vmean = out[:B, N_POLICY]
    vstd = out[:B, N_POLICY + 1]
    return logits, vmean, vstd


def init_params(key, in_dim, hidden, critics=2):
    """PyTorch nn.Linear-style init: U(-1/sqrt(fan_in), 1/sqrt(fan_in))."""
    ks = jax.random.split(key, 8)
    scale1 = 1.0 / jnp.sqrt(in_dim)
    scale2 = 1.0 / jnp.sqrt(hidden)
    return {
        "w1": jax.random.uniform(ks[0], (in_dim, hidden), jnp.float32, -scale1, scale1),
        "b1": jax.random.uniform(ks[1], (1, hidden), jnp.float32, -scale1, scale1),
        "g1": jnp.ones((1, hidden), jnp.float32),
        "be1": jnp.zeros((1, hidden), jnp.float32),
        "w2": jax.random.uniform(ks[2], (hidden, hidden), jnp.float32, -scale2, scale2),
        "b2": jax.random.uniform(ks[3], (1, hidden), jnp.float32, -scale2, scale2),
        "g2": jnp.ones((1, hidden), jnp.float32),
        "be2": jnp.zeros((1, hidden), jnp.float32),
        "wp": jax.random.uniform(ks[4], (hidden, 5), jnp.float32, -scale2, scale2),
        "bp": jax.random.uniform(ks[5], (1, 5), jnp.float32, -scale2, scale2),
        # critic heads stacked: (hidden, critics), (1, critics)
        "wv": jax.random.uniform(ks[6], (hidden, critics), jnp.float32, -scale2, scale2),
        "bv": jax.random.uniform(ks[7], (1, critics), jnp.float32, -scale2, scale2),
    }


def reference_forward(x, params, critics=2):
    """Pure-JAX reference of the PyTorch forward (eval mode) using the same numeric
    path as the kernel (bf16 MXU operands, f32 accumulation / elementwise math)."""
    xb = x.astype(jnp.bfloat16)
    w1 = params["w1"].astype(jnp.bfloat16)
    w2 = params["w2"].astype(jnp.bfloat16)
    wp = params["wp"].astype(jnp.bfloat16)
    wv = params["wv"].astype(jnp.bfloat16)

    h = jnp.dot(xb, w1, preferred_element_type=jnp.float32) + params["b1"]
    h = _layernorm(h, params["g1"], params["be1"])
    h = _gelu_exact(h)
    h = jnp.dot(h.astype(jnp.bfloat16), w2, preferred_element_type=jnp.float32) + params["b2"]
    h = _layernorm(h, params["g2"], params["be2"])
    h = _gelu_exact(h)
    hb = h.astype(jnp.bfloat16)
    logits = jnp.clip(
        jnp.dot(hb, wp, preferred_element_type=jnp.float32) + params["bp"], -10.0, 10.0)
    vs = jnp.dot(hb, wv, preferred_element_type=jnp.float32) + params["bv"]
    vmean = jnp.mean(vs, axis=1)
    vstd = jnp.std(vs, axis=1, ddof=1)
    return logits, vmean, vstd


if __name__ == "__main__":
    B, IN_DIM, HIDDEN, CRITICS = 16, 32, 128, 2

    key = jax.random.PRNGKey(0)
    k_x, k_p = jax.random.split(key)
    x = jax.random.normal(k_x, (B, IN_DIM), jnp.float32)
    params = init_params(k_p, IN_DIM, HIDDEN, CRITICS)

    # tile_b=8 so the small example exercises a multi-step batch grid (grid=(2,)).
    logits, vmean, vstd = policy_critic_forward(x, params, critics=CRITICS, tile_b=8)
    jax.block_until_ready((logits, vmean, vstd))

    # sanity check against pure-JAX reference with the same bf16-matmul numeric path
    ref_logits, ref_vmean, ref_vstd = reference_forward(x, params, critics=CRITICS)
    assert logits.shape == (B, 5) and vmean.shape == (B,) and vstd.shape == (B,)
    assert jnp.allclose(logits, ref_logits, atol=2e-2, rtol=2e-2)
    assert jnp.allclose(vmean, ref_vmean, atol=2e-2, rtol=2e-2)
    assert jnp.allclose(vstd, ref_vstd, atol=2e-2, rtol=2e-2)

    print("KERNEL_OK")
</pallas_src>

<mosaic_0001>
module attributes {stable_mosaic.version = 11 : i64} {
  func.func @policy_critic_kernel(%arg0: i32, %arg1: memref<8x32xbf16, #tpu.memory_space<vmem>>, %arg2: memref<32x128xbf16, #tpu.memory_space<vmem>>, %arg3: memref<128x128xbf16, #tpu.memory_space<vmem>>, %arg4: memref<128x128xbf16, #tpu.memory_space<vmem>>, %arg5: memref<8x128xf32, #tpu.memory_space<vmem>>, %arg6: memref<1x128xf32, #tpu.memory_space<vmem>>, %arg7: memref<8x128xf32, #tpu.memory_space<vmem>>) attributes {dimension_semantics = [#tpu.dimension_semantics<parallel>], iteration_bounds = array<i64: 2>, scalar_prefetch = 0 : i64, scratch_operands = 0 : i64, tpu.core_type = #tpu.core_type<tc>, window_params = [{transform_indices = @transform_0, window_bounds = array<i64: 8, 32>}, {pipeline_mode = #tpu.pipeline_mode<synchronous>, transform_indices = @transform_1, window_bounds = array<i64: 32, 128>}, {pipeline_mode = #tpu.pipeline_mode<synchronous>, transform_indices = @transform_2, window_bounds = array<i64: 128, 128>}, {pipeline_mode = #tpu.pipeline_mode<synchronous>, transform_indices = @transform_3, window_bounds = array<i64: 128, 128>}, {pipeline_mode = #tpu.pipeline_mode<synchronous>, transform_indices = @transform_4, window_bounds = array<i64: 8, 128>}, {pipeline_mode = #tpu.pipeline_mode<synchronous>, transform_indices = @transform_5, window_bounds = array<i64: 1, 128>}, {transform_indices = @transform_6, window_bounds = array<i64: 8, 128>}]} {
    %c0 = arith.constant 0 : index
    %c0_0 = arith.constant 0 : index
    %0 = vector.load %arg1[%c0, %c0_0] : memref<8x32xbf16, #tpu.memory_space<vmem>>, vector<8x32xbf16>
    %c0_1 = arith.constant 0 : index
    %c0_2 = arith.constant 0 : index
    %1 = vector.load %arg5[%c0_1, %c0_2] : memref<8x128xf32, #tpu.memory_space<vmem>>, vector<1x128xf32>
    %c1 = arith.constant 1 : index
    %c0_3 = arith.constant 0 : index
    %2 = vector.load %arg5[%c1, %c0_3] : memref<8x128xf32, #tpu.memory_space<vmem>>, vector<1x128xf32>
    %c2 = arith.constant 2 : index
    %c0_4 = arith.constant 0 : index
    %3 = vector.load %arg5[%c2, %c0_4] : memref<8x128xf32, #tpu.memory_space<vmem>>, vector<1x128xf32>
    %c3 = arith.constant 3 : index
    %c0_5 = arith.constant 0 : index
    %4 = vector.load %arg5[%c3, %c0_5] : memref<8x128xf32, #tpu.memory_space<vmem>>, vector<1x128xf32>
    %c4 = arith.constant 4 : index
    %c0_6 = arith.constant 0 : index
    %5 = vector.load %arg5[%c4, %c0_6] : memref<8x128xf32, #tpu.memory_space<vmem>>, vector<1x128xf32>
    %c5 = arith.constant 5 : index
    %c0_7 = arith.constant 0 : index
    %6 = vector.load %arg5[%c5, %c0_7] : memref<8x128xf32, #tpu.memory_space<vmem>>, vector<1x128xf32>
    %c0_8 = arith.constant 0 : index
    %c0_9 = arith.constant 0 : index
    %7 = vector.load %arg2[%c0_8, %c0_9] : memref<32x128xbf16, #tpu.memory_space<vmem>>, vector<32x128xbf16>
    %cst = arith.constant dense<0.000000e+00> : vector<8x128xf32>
    %8 = tpu.matmul %0, %7, %cst {dimension_numbers = #tpu.dot_dimension_numbers<[1], [0], [0], [1], [0, 0, 1, 1], [], []>} : vector<8x32xbf16>, vector<32x128xbf16>, vector<8x128xf32> -> vector<8x128xf32>
    %9 = vector.broadcast %1 : vector<1x128xf32> to vector<8x128xf32>
    %10 = arith.addf %8, %9 : vector<8x128xf32>
    %cst_10 = arith.constant dense<0.000000e+00> : vector<8xf32>
    %11 = vector.multi_reduction <add>, %10, %cst_10 [1] : vector<8x128xf32> to vector<8xf32>
    %12 = vector.shape_cast %11 : vector<8xf32> to vector<8x1xf32>
    %cst_11 = arith.constant 1.280000e+02 : f32
    %13 = vector.broadcast %cst_11 : f32 to vector<8x1xf32>
    %14 = arith.divf %12, %13 : vector<8x1xf32>
    %15 = vector.broadcast %14 : vector<8x1xf32> to vector<8x128xf32>
    %16 = arith.subf %10, %15 : vector<8x128xf32>
    %17 = arith.mulf %16, %16 : vector<8x128xf32>
    %cst_12 = arith.constant dense<0.000000e+00> : vector<8xf32>
    %18 = vector.multi_reduction <add>, %17, %cst_12 [1] : vector<8x128xf32> to vector<8xf32>
    %19 = vector.shape_cast %18 : vector<8xf32> to vector<8x1xf32>
    %cst_13 = arith.constant 1.280000e+02 : f32
    %20 = vector.broadcast %cst_13 : f32 to vector<8x1xf32>
    %21 = arith.divf %19, %20 : vector<8x1xf32>
    %cst_14 = arith.constant 9.99999974E-6 : f32
    %22 = vector.broadcast %cst_14 : f32 to vector<8x1xf32>
    %23 = arith.addf %21, %22 : vector<8x1xf32>
    %24 = math.rsqrt %23 : vector<8x1xf32>
    %25 = vector.broadcast %24 : vector<8x1xf32> to vector<8x128xf32>
    %26 = arith.mulf %16, %25 : vector<8x128xf32>
    %27 = vector.broadcast %2 : vector<1x128xf32> to vector<8x128xf32>
    %28 = arith.mulf %26, %27 : vector<8x128xf32>
    %29 = vector.broadcast %3 : vector<1x128xf32> to vector<8x128xf32>
    %30 = arith.addf %28, %29 : vector<8x128xf32>
    %cst_15 = arith.constant 5.000000e-01 : f32
    %31 = vector.broadcast %cst_15 : f32 to vector<8x128xf32>
    %32 = arith.mulf %31, %30 : vector<8x128xf32>
    %cst_16 = arith.constant 2.000000e+00 : f32
    %33 = math.sqrt %cst_16 : f32
    %cst_17 = arith.constant 1.000000e+00 : f32
    %34 = arith.divf %cst_17, %33 : f32
    %35 = vector.broadcast %34 : f32 to vector<8x128xf32>
    %36 = arith.mulf %30, %35 : vector<8x128xf32>
    %37 = math.erf %36 : vector<8x128xf32>
    %cst_18 = arith.constant 1.000000e+00 : f32
    %38 = vector.broadcast %cst_18 : f32 to vector<8x128xf32>
    %39 = arith.addf %38, %37 : vector<8x128xf32>
    %40 = arith.mulf %32, %39 : vector<8x128xf32>
    %41 = arith.truncf %40 : vector<8x128xf32> to vector<8x128xbf16>
    %c0_19 = arith.constant 0 : index
    %c0_20 = arith.constant 0 : index
    %42 = vector.load %arg3[%c0_19, %c0_20] : memref<128x128xbf16, #tpu.memory_space<vmem>>, vector<128x128xbf16>
    %cst_21 = arith.constant dense<0.000000e+00> : vector<8x128xf32>
    %43 = tpu.matmul %41, %42, %cst_21 {dimension_numbers = #tpu.dot_dimension_numbers<[1], [0], [0], [1], [0, 0, 1, 1], [], []>} : vector<8x128xbf16>, vector<128x128xbf16>, vector<8x128xf32> -> vector<8x128xf32>
    %44 = vector.broadcast %4 : vector<1x128xf32> to vector<8x128xf32>
    %45 = arith.addf %43, %44 : vector<8x128xf32>
    %cst_22 = arith.constant dense<0.000000e+00> : vector<8xf32>
    %46 = vector.multi_reduction <add>, %45, %cst_22 [1] : vector<8x128xf32> to vector<8xf32>
    %47 = vector.shape_cast %46 : vector<8xf32> to vector<8x1xf32>
    %cst_23 = arith.constant 1.280000e+02 : f32
    %48 = vector.broadcast %cst_23 : f32 to vector<8x1xf32>
    %49 = arith.divf %47, %48 : vector<8x1xf32>
    %50 = vector.broadcast %49 : vector<8x1xf32> to vector<8x128xf32>
    %51 = arith.subf %45, %50 : vector<8x128xf32>
    %52 = arith.mulf %51, %51 : vector<8x128xf32>
    %cst_24 = arith.constant dense<0.000000e+00> : vector<8xf32>
    %53 = vector.multi_reduction <add>, %52, %cst_24 [1] : vector<8x128xf32> to vector<8xf32>
    %54 = vector.shape_cast %53 : vector<8xf32> to vector<8x1xf32>
    %cst_25 = arith.constant 1.280000e+02 : f32
    %55 = vector.broadcast %cst_25 : f32 to vector<8x1xf32>
    %56 = arith.divf %54, %55 : vector<8x1xf32>
    %cst_26 = arith.constant 9.99999974E-6 : f32
    %57 = vector.broadcast %cst_26 : f32 to vector<8x1xf32>
    %58 = arith.addf %56, %57 : vector<8x1xf32>
    %59 = math.rsqrt %58 : vector<8x1xf32>
    %60 = vector.broadcast %59 : vector<8x1xf32> to vector<8x128xf32>
    %61 = arith.mulf %51, %60 : vector<8x128xf32>
    %62 = vector.broadcast %5 : vector<1x128xf32> to vector<8x128xf32>
    %63 = arith.mulf %61, %62 : vector<8x128xf32>
    %64 = vector.broadcast %6 : vector<1x128xf32> to vector<8x128xf32>
    %65 = arith.addf %63, %64 : vector<8x128xf32>
    %cst_27 = arith.constant 5.000000e-01 : f32
    %66 = vector.broadcast %cst_27 : f32 to vector<8x128xf32>
    %67 = arith.mulf %66, %65 : vector<8x128xf32>
    %cst_28 = arith.constant 2.000000e+00 : f32
    %68 = math.sqrt %cst_28 : f32
    %cst_29 = arith.constant 1.000000e+00 : f32
    %69 = arith.divf %cst_29, %68 : f32
    %70 = vector.broadcast %69 : f32 to vector<8x128xf32>
    %71 = arith.mulf %65, %70 : vector<8x128xf32>
    %72 = math.erf %71 : vector<8x128xf32>
    %cst_30 = arith.constant 1.000000e+00 : f32
    %73 = vector.broadcast %cst_30 : f32 to vector<8x128xf32>
    %74 = arith.addf %73, %72 : vector<8x128xf32>
    %75 = arith.mulf %67, %74 : vector<8x128xf32>
    %76 = arith.truncf %75 : vector<8x128xf32> to vector<8x128xbf16>
    %c0_31 = arith.constant 0 : index
    %c0_32 = arith.constant 0 : index
    %77 = vector.load %arg4[%c0_31, %c0_32] : memref<128x128xbf16, #tpu.memory_space<vmem>>, vector<128x128xbf16>
    %cst_33 = arith.constant dense<0.000000e+00> : vector<8x128xf32>
    %78 = tpu.matmul %76, %77, %cst_33 {dimension_numbers = #tpu.dot_dimension_numbers<[1], [0], [0], [1], [0, 0, 1, 1], [], []>} : vector<8x128xbf16>, vector<128x128xbf16>, vector<8x128xf32> -> vector<8x128xf32>
    %c0_34 = arith.constant 0 : index
    %c0_35 = arith.constant 0 : index
    %79 = vector.load %arg6[%c0_34, %c0_35] : memref<1x128xf32, #tpu.memory_space<vmem>>, vector<1x128xf32>
    %80 = vector.broadcast %79 : vector<1x128xf32> to vector<8x128xf32>
    %81 = arith.addf %78, %80 : vector<8x128xf32>
    %82 = tpu.iota {dimensions = array<i32: 1>} : vector<8x128xi32>
    %c5_i32 = arith.constant 5 : i32
    %83 = vector.broadcast %c5_i32 : i32 to vector<8x128xi32>
    %84 = arith.cmpi sge, %82, %83 : vector<8x128xi32>
    %c7_i32 = arith.constant 7 : i32
    %85 = vector.broadcast %c7_i32 : i32 to vector<8x128xi32>
    %86 = arith.cmpi slt, %82, %85 : vector<8x128xi32>
    %87 = arith.andi %84, %86 : vector<8x128xi1>
    %cst_36 = arith.constant 0.000000e+00 : f32
    %88 = vector.broadcast %cst_36 : f32 to vector<8x128xf32>
    %89 = arith.select %87, %81, %88 : vector<8x128xi1>, vector<8x128xf32>
    %cst_37 = arith.constant dense<0.000000e+00> : vector<8xf32>
    %90 = vector.multi_reduction <add>, %89, %cst_37 [1] : vector<8x128xf32> to vector<8xf32>
    %91 = vector.shape_cast %90 : vector<8xf32> to vector<8x1xf32>
    %cst_38 = arith.constant 5.000000e-01 : f32
    %92 = vector.broadcast %cst_38 : f32 to vector<8x1xf32>
    %93 = arith.mulf %91, %92 : vector<8x1xf32>
    %94 = vector.broadcast %93 : vector<8x1xf32> to vector<8x128xf32>
    %95 = arith.subf %81, %94 : vector<8x128xf32>
    %cst_39 = arith.constant 0.000000e+00 : f32
    %96 = vector.broadcast %cst_39 : f32 to vector<8x128xf32>
    %97 = arith.select %87, %95, %96 : vector<8x128xi1>, vector<8x128xf32>
    %98 = arith.mulf %97, %97 : vector<8x128xf32>
    %cst_40 = arith.constant dense<0.000000e+00> : vector<8xf32>
    %99 = vector.multi_reduction <add>, %98, %cst_40 [1] : vector<8x128xf32> to vector<8xf32>
    %100 = vector.shape_cast %99 : vector<8xf32> to vector<8x1xf32>
    %cst_41 = arith.constant 1.000000e+00 : f32
    %101 = vector.broadcast %cst_41 : f32 to vector<8x1xf32>
    %102 = arith.mulf %100, %101 : vector<8x1xf32>
    %103 = math.sqrt %102 : vector<8x1xf32>
    %c5_i32_42 = arith.constant 5 : i32
    %104 = vector.broadcast %c5_i32_42 : i32 to vector<8x128xi32>
    %105 = arith.cmpi slt, %82, %104 : vector<8x128xi32>
    %cst_43 = arith.constant -1.000000e+01 : f32
    %cst_44 = arith.constant 1.000000e+01 : f32
    %106 = vector.broadcast %cst_43 : f32 to vector<8x128xf32>
    %107 = arith.maximumf %106, %81 : vector<8x128xf32>
    %108 = vector.broadcast %cst_44 : f32 to vector<8x128xf32>
    %109 = arith.minimumf %108, %107 : vector<8x128xf32>
    %cst_45 = arith.constant 0.000000e+00 : f32
    %110 = vector.broadcast %cst_45 : f32 to vector<8x128xf32>
    %111 = arith.select %105, %109, %110 : vector<8x128xi1>, vector<8x128xf32>
    %c5_i32_46 = arith.constant 5 : i32
    %112 = vector.broadcast %c5_i32_46 : i32 to vector<8x128xi32>
    %113 = arith.cmpi eq, %82, %112 : vector<8x128xi32>
    %114 = vector.shape_cast %93 : vector<8x1xf32> to vector<8x1xf32>
    %115 = vector.broadcast %114 : vector<8x1xf32> to vector<8x128xf32>
    %116 = arith.select %113, %115, %111 : vector<8x128xi1>, vector<8x128xf32>
    %c6_i32 = arith.constant 6 : i32
    %117 = vector.broadcast %c6_i32 : i32 to vector<8x128xi32>
    %118 = arith.cmpi eq, %82, %117 : vector<8x128xi32>
    %119 = vector.shape_cast %103 : vector<8x1xf32> to vector<8x1xf32>
    %120 = vector.broadcast %119 : vector<8x1xf32> to vector<8x128xf32>
    %121 = arith.select %118, %120, %116 : vector<8x128xi1>, vector<8x128xf32>
    %c0_47 = arith.constant 0 : index
    %c0_48 = arith.constant 0 : index
    %122 = vector.load %arg7[%c0_47, %c0_48] : memref<8x128xf32, #tpu.memory_space<vmem>>, vector<8x128xf32>
    tpu.vector_store %arg7[%c0_47, %c0_48], %121 {strides = array<i32>} : memref<8x128xf32, #tpu.memory_space<vmem>>, vector<8x128xf32>,
    return
  }
  func.func @transform_0(%arg0: i32) -> (i32, i32) {
    %c0_i32 = arith.constant 0 : i32
    %c0_i32_0 = arith.constant 0 : i32
    return %arg0, %c0_i32 : i32, i32
  }
  func.func @transform_1(%arg0: i32) -> (i32, i32) {
    %c0_i32 = arith.constant 0 : i32
    %c0_i32_0 = arith.constant 0 : i32
    %c0_i32_1 = arith.constant 0 : i32
    return %c0_i32, %c0_i32_0 : i32, i32
  }
  func.func @transform_2(%arg0: i32) -> (i32, i32) {
    %c0_i32 = arith.constant 0 : i32
    %c0_i32_0 = arith.constant 0 : i32
    %c0_i32_1 = arith.constant 0 : i32
    return %c0_i32, %c0_i32_0 : i32, i32
  }
  func.func @transform_3(%arg0: i32) -> (i32, i32) {
    %c0_i32 = arith.constant 0 : i32
    %c0_i32_0 = arith.constant 0 : i32
    %c0_i32_1 = arith.constant 0 : i32
    return %c0_i32, %c0_i32_0 : i32, i32
  }
  func.func @transform_4(%arg0: i32) -> (i32, i32) {
    %c0_i32 = arith.constant 0 : i32
    %c0_i32_0 = arith.constant 0 : i32
    %c0_i32_1 = arith.constant 0 : i32
    return %c0_i32, %c0_i32_0 : i32, i32
  }
  func.func @transform_5(%arg0: i32) -> (i32, i32) {
    %c0_i32 = arith.constant 0 : i32
    %c0_i32_0 = arith.constant 0 : i32
    %c0_i32_1 = arith.constant 0 : i32
    return %c0_i32, %c0_i32_0 : i32, i32
  }
  func.func @transform_6(%arg0: i32) -> (i32, i32) {
    %c0_i32 = arith.constant 0 : i32
    %c0_i32_0 = arith.constant 0 : i32
    return %arg0, %c0_i32 : i32, i32
  }
}

</mosaic_0001>

<llo_original>
// kernel: policy_critic_forward.1
$region0: #{policy_critic_forward.1}
  #allocation0 [shape = 'u32[]', space=smem, size = 0x4, offset = 0x4, fixed_abs, tag = 'smem constant byte address 0x4 - core index']
  #allocation1 [shape = 'u32[72,128]{1,0:T(1,128)}', space=vmem, size = 0x9000, scoped, tag = 'internal scratch']
  %s0 = inlined_call_operand.vmem [shape: bf16[16,32], index: 0, kind: input, shape index: {}]
  %s1 = inlined_call_operand.vmem [shape: bf16[32,128], index: 1, kind: input, shape index: {}]
  %s2 = inlined_call_operand.vmem [shape: bf16[128,128], index: 2, kind: input, shape index: {}]
  %s3 = inlined_call_operand.vmem [shape: bf16[128,128], index: 3, kind: input, shape index: {}]
  %s4 = inlined_call_operand.vmem [shape: f32[8,128], index: 4, kind: input, shape index: {}]
  %s5 = inlined_call_operand.vmem [shape: f32[1,128], index: 5, kind: input, shape index: {}]
  %s6 = inlined_call_operand.vmem [shape: f32[16,128], index: 6, kind: output, shape index: {}]
  %s7 = sld [smem:[#allocation0]]
  $region57: #{policy_critic_forward.1} parent=0
    _
  %s9 = ssub.s32 1, %s7
  %s10 = scalar_select 0, %s9, %s7
  loop: start=0, step=1, limit=4
  $region2: #{policy_critic_forward.1} parent=0 // loop_pre_header
    _
  $region3: #{policy_critic_forward.1} parent=0 // loop_header
    %s12 = sphi 0, %s16
    %p13 = scmp.ge.s32.totalorder %s12, 4
    %s22 = sphi 0, %s24
    %s25 = sphi 0, %s22
    %s26 = sphi 0, %s25
    %s42 = sphi 0, %s26
    %s46 = sphi 0, %s46
    %s48 = sphi 0, %s46
    %s49 = sphi 0, %s48
    %s63 = sphi 0, %s49
    %s67 = sphi 0, %s67
    %s69 = sphi 0, %s67
    %s70 = sphi 0, %s69
    %s84 = sphi 0, %s70
    %s88 = sphi 0, %s88
    %s90 = sphi 0, %s88
    %s91 = sphi 0, %s90
    %s105 = sphi 0, %s91
    %s109 = sphi 0, %s109
    %s111 = sphi 0, %s109
    %s112 = sphi 0, %s111
    %s126 = sphi 0, %s112
    %s130 = sphi 0, %s130
    %s132 = sphi 0, %s130
    %s133 = sphi 0, %s132
    %s147 = sphi 0, %s133
    %s153 = sphi 0, %s155
    %s156 = sphi 0, %s153
    %s157 = sphi 0, %s156
    %s173 = sphi 0, %s157
  $region4: #{policy_critic_forward.1} parent=0 // loop_header_branch
    %15 = sbr.rel (%p13) target = $region8
  $region5: #{policy_critic_forward.1} parent=0 // loop_body
    %s17 = ssub.s32 %s12, 1
    %s18 = ssub.s32 %s12, 2
    %s19 = sadd.s32 %s12, 1
    %s20 = ssub.s32 %s12, %s19
    %p21 = scmp.eq.s32.totalorder %s20, 0
    %s23 = sadd.s32 %s22, 1
    %s24 = scalar_select %p21, %s22, %s23
    %p27 = pneg %p21
    %p28 = scmp.eq.s32.totalorder %s12, 1
    %p29 = por %p27, %p28
    %p30 = scmp.ne.s32.totalorder %s22, %s25
    %p31 = scmp.eq.s32.totalorder %s12, 0
    %p32 = por %p30, %p31
    %p33 = scmp.ne.s32.totalorder %s22, %s25
    %p34 = scmp.eq.s32.totalorder %s17, 1
    %p35 = por %p33, %p34
    %p36 = scmp.ne.s32.totalorder %s25, %s26
    %p37 = scmp.eq.s32.totalorder %s17, 0
    %p38 = por %p36, %p37
    %p39 = scmp.ne.s32.totalorder %s25, %s26
    %p40 = scmp.eq.s32.totalorder %s18, 1
    %p41 = por %p39, %p40
    %p43 = scmp.ne.s32.totalorder %s26, %s42
    %p44 = scmp.eq.s32.totalorder %s18, 0
    %p45 = por %p43, %p44
    %s47 = sadd.s32 %s46, 1
    %p50 = scmp.eq.s32.totalorder %s12, 1
    %p51 = scmp.ne.s32.totalorder %s46, %s48
    %p52 = scmp.eq.s32.totalorder %s12, 0
    %p53 = por %p51, %p52
    %p54 = scmp.ne.s32.totalorder %s46, %s48
    %p55 = scmp.eq.s32.totalorder %s17, 1
    %p56 = por %p54, %p55
    %p57 = scmp.ne.s32.totalorder %s48, %s49
    %p58 = scmp.eq.s32.totalorder %s17, 0
    %p59 = por %p57, %p58
    %p60 = scmp.ne.s32.totalorder %s48, %s49
    %p61 = scmp.eq.s32.totalorder %s18, 1
    %p62 = por %p60, %p61
    %p64 = scmp.ne.s32.totalorder %s49, %s63
    %p65 = scmp.eq.s32.totalorder %s18, 0
    %p66 = por %p64, %p65
    %s68 = sadd.s32 %s67, 1
    %p71 = scmp.eq.s32.totalorder %s12, 1
    %p72 = scmp.ne.s32.totalorder %s67, %s69
    %p73 = scmp.eq.s32.totalorder %s12, 0
    %p74 = por %p72, %p73
    %p75 = scmp.ne.s32.totalorder %s67, %s69
    %p76 = scmp.eq.s32.totalorder %s17, 1
    %p77 = por %p75, %p76
    %p78 = scmp.ne.s32.totalorder %s69, %s70
    %p79 = scmp.eq.s32.totalorder %s17, 0
    %p80 = por %p78, %p79
    %p81 = scmp.ne.s32.totalorder %s69, %s70
    %p82 = scmp.eq.s32.totalorder %s18, 1
    %p83 = por %p81, %p82
    %p85 = scmp.ne.s32.totalorder %s70, %s84
    %p86 = scmp.eq.s32.totalorder %s18, 0
    %p87 = por %p85, %p86
    %s89 = sadd.s32 %s88, 1
    %p92 = scmp.eq.s32.totalorder %s12, 1
    %p93 = scmp.ne.s32.totalorder %s88, %s90
    %p94 = scmp.eq.s32.totalorder %s12, 0
    %p95 = por %p93, %p94
    %p96 = scmp.ne.s32.totalorder %s88, %s90
    %p97 = scmp.eq.s32.totalorder %s17, 1
    %p98 = por %p96, %p97
    %p99 = scmp.ne.s32.totalorder %s90, %s91
    %p100 = scmp.eq.s32.totalorder %s17, 0
    %p101 = por %p99, %p100
    %p102 = scmp.ne.s32.totalorder %s90, %s91
    %p103 = scmp.eq.s32.totalorder %s18, 1
    %p104 = por %p102, %p103
    %p106 = scmp.ne.s32.totalorder %s91, %s105
    %p107 = scmp.eq.s32.totalorder %s18, 0
    %p108 = por %p106, %p107
    %s110 = sadd.s32 %s109, 1
    %p113 = scmp.eq.s32.totalorder %s12, 1
    %p114 = scmp.ne.s32.totalorder %s109, %s111
    %p115 = scmp.eq.s32.totalorder %s12, 0
    %p116 = por %p114, %p115
    %p117 = scmp.ne.s32.totalorder %s109, %s111
    %p118 = scmp.eq.s32.totalorder %s17, 1
    %p119 = por %p117, %p118
    %p120 = scmp.ne.s32.totalorder %s111, %s112
    %p121 = scmp.eq.s32.totalorder %s17, 0
    %p122 = por %p120, %p121
    %p123 = scmp.ne.s32.totalorder %s111, %s112
    %p124 = scmp.eq.s32.totalorder %s18, 1
    %p125 = por %p123, %p124
    %p127 = scmp.ne.s32.totalorder %s112, %s126
    %p128 = scmp.eq.s32.totalorder %s18, 0
    %p129 = por %p127, %p128
    %s131 = sadd.s32 %s130, 1
    %p134 = scmp.eq.s32.totalorder %s12, 1
    %p135 = scmp.ne.s32.totalorder %s130, %s132
    %p136 = scmp.eq.s32.totalorder %s12, 0
    %p137 = por %p135, %p136
    %p138 = scmp.ne.s32.totalorder %s130, %s132
    %p139 = scmp.eq.s32.totalorder %s17, 1
    %p140 = por %p138, %p139
    %p141 = scmp.ne.s32.totalorder %s132, %s133
    %p142 = scmp.eq.s32.totalorder %s17, 0
    %p143 = por %p141, %p142
    %p144 = scmp.ne.s32.totalorder %s132, %s133
    %p145 = scmp.eq.s32.totalorder %s18, 1
    %p146 = por %p144, %p145
    %p148 = scmp.ne.s32.totalorder %s133, %s147
    %p149 = scmp.eq.s32.totalorder %s18, 0
    %p150 = por %p148, %p149
    %s151 = ssub.s32 %s12, %s19
    %p152 = scmp.eq.s32.totalorder %s151, 0
    %s154 = sadd.s32 %s153, 1
    %s155 = scalar_select %p152, %s153, %s154
    %p158 = pneg %p152
    %p159 = scmp.eq.s32.totalorder %s12, 1
    %p160 = por %p158, %p159
    %p161 = scmp.ne.s32.totalorder %s153, %s156
    %p162 = scmp.eq.s32.totalorder %s12, 0
    %p163 = por %p161, %p162
    %p164 = scmp.ne.s32.totalorder %s153, %s156
    %p165 = scmp.eq.s32.totalorder %s17, 1
    %p166 = por %p164, %p165
    %p167 = scmp.ne.s32.totalorder %s156, %s157
    %p168 = scmp.eq.s32.totalorder %s17, 0
    %p169 = por %p167, %p168
    %p170 = scmp.ne.s32.totalorder %s156, %s157
    %p171 = scmp.eq.s32.totalorder %s18, 1
    %p172 = por %p170, %p171
    %p174 = scmp.ne.s32.totalorder %s157, %s173
    %p175 = scmp.eq.s32.totalorder %s18, 0
    %p176 = por %p174, %p175
    %p177 = scmp.le.s32.totalorder 1, %s12
    %p178 = scmp.lt.s32.totalorder %s12, 3
    %p179 = pnand %p177, %p178
    %p180 = pneg %p179
    // Predicated region
    $region9: #{policy_critic_forward.1} parent=5 // pred_check
      _
    $region10: #{policy_critic_forward.1} parent=5 // pred_check_branch
      %182 = sbr.rel (%p179) target = $region12
    $region11: #{policy_critic_forward.1} parent=5 // pred_region
      %s183 = ssub.s32 %s12, 1
      // Predicated region
      $region13: #{policy_critic_forward.1} parent=11 // pred_check
        %p184 = pneg %p59
      $region14: #{policy_critic_forward.1} parent=11 // pred_check_branch
        %186 = sbr.rel (%p184) target = $region16
      $region15: #{policy_critic_forward.1} parent=11 // pred_region
        _
      $region16: #{policy_critic_forward.1} parent=11 // pred_fallthru
        _
      // Predicated region
      $region17: #{policy_critic_forward.1} parent=11 // pred_check
        %p187 = pneg %p80
      $region18: #{policy_critic_forward.1} parent=11 // pred_check_branch
        %189 = sbr.rel (%p187) target = $region20
      $region19: #{policy_critic_forward.1} parent=11 // pred_region
        _
      $region20: #{policy_critic_forward.1} parent=11 // pred_fallthru
        _
      // Predicated region
      $region21: #{policy_critic_forward.1} parent=11 // pred_check
        %p190 = pneg %p101
      $region22: #{policy_critic_forward.1} parent=11 // pred_check_branch
        %192 = sbr.rel (%p190) target = $region24
      $region23: #{policy_critic_forward.1} parent=11 // pred_region
        _
      $region24: #{policy_critic_forward.1} parent=11 // pred_fallthru
        _
      // Predicated region
      $region25: #{policy_critic_forward.1} parent=11 // pred_check
        %p193 = pneg %p122
      $region26: #{policy_critic_forward.1} parent=11 // pred_check_branch
        %195 = sbr.rel (%p193) target = $region28
      $region27: #{policy_critic_forward.1} parent=11 // pred_region
        _
      $region28: #{policy_critic_forward.1} parent=11 // pred_fallthru
        _
      // Predicated region
      $region29: #{policy_critic_forward.1} parent=11 // pred_check
        %p196 = pneg %p143
      $region30: #{policy_critic_forward.1} parent=11 // pred_check_branch
        %198 = sbr.rel (%p196) target = $region32
      $region31: #{policy_critic_forward.1} parent=11 // pred_region
        _
      $region32: #{policy_critic_forward.1} parent=11 // pred_fallthru
        _
    $region12: #{policy_critic_forward.1} parent=5 // pred_fallthru
      _
    %p199 = scmp.lt.s32.totalorder %s12, 2
    // Predicated region
    $region33: #{policy_critic_forward.1} parent=5 // pred_check
      %p200 = pneg %p199
    $region34: #{policy_critic_forward.1} parent=5 // pred_check_branch
      %202 = sbr.rel (%p200) target = $region36
    $region35: #{policy_critic_forward.1} parent=5 // pred_region
      // Predicated region
      $region37: #{policy_critic_forward.1} parent=35 // pred_check
        %p203 = pneg %p32
      $region38: #{policy_critic_forward.1} parent=35 // pred_check_branch
        %205 = sbr.rel (%p203) target = $region40
      $region39: #{policy_critic_forward.1} parent=35 // pred_region
        %p206 = scmp.lt.s32.totalorder %s12, 1
        %s207 = scalar_select %p206, %s12, 1
        %s208 = smul.addr %s207, 4
        %s209 = scalar_lea.vmem %s0, %s208
      $region40: #{policy_critic_forward.1} parent=35 // pred_fallthru
        _
    $region36: #{policy_critic_forward.1} parent=5 // pred_fallthru
      _
    %p210 = scmp.le.s32.totalorder 1, %s12
    %p211 = scmp.lt.s32.totalorder %s12, 3
    %p212 = pnand %p210, %p211
    %p213 = pneg %p212
    // Predicated region
    $region41: #{policy_critic_forward.1} parent=5 // pred_check
      _
    $region42: #{policy_critic_forward.1} parent=5 // pred_check_branch
      %215 = sbr.rel (%p212) target = $region44
    $region43: #{policy_critic_forward.1} parent=5 // pred_region
      %s216 = ssub.s32 %s12, 1
      %p217 = scmp.lt.s32.totalorder %s17, 1
      %s218 = scalar_select %p217, %s17, 1
      %s219 = smul.addr %s218, 4
      %s220 = scalar_lea.vmem %s0, %s219
      %p221 = pneg %p38
      %p222 = pneg %p35
      %p223 = pneg %p59
      %p224 = pneg %p56
      %p225 = pneg %p80
      %p226 = pneg %p77
      %p227 = pneg %p101
      %p228 = pneg %p98
      %p229 = pneg %p122
      %p230 = pneg %p119
      %p231 = pneg %p143
      %p232 = pneg %p140
      %p233 = pneg %p169
      %p234 = pneg %p166
      %p235 = scmp.lt.s32.totalorder %s17, 1
      %s236 = scalar_select %p235, %s17, 1
      %s237 = smul.addr %s236, 8
      %s238 = scalar_lea.vmem %s6, %s237
      %p239 = scmp.lt.s32.totalorder %s17, 1
      %s240 = scalar_select %p239, %s17, 1
      %s241 = smul.addr %s240, 4
      %s242 = scalar_lea.vmem %s0, %s241
      %p243 = scmp.lt.s32.totalorder %s17, 1
      %s244 = scalar_select %p243, %s17, 1
      %s245 = smul.addr %s244, 8
      %s246 = scalar_lea.vmem %s6, %s245
      %v248 = vld [vmem:[%s242] sm:$0xf]
      %v249 = vld [vmem:[%s4] sm:$0x1]
      %v250 = vld [vmem:[%s4 + $0x1] sm:$0x1]
      %v251 = vld [vmem:[%s4 + $0x2] sm:$0x1]
      %v252 = vld [vmem:[%s4 + $0x3] sm:$0x1]
      %v253 = vld [vmem:[%s4 + $0x4] sm:$0x1]
      %v254 = vld [vmem:[%s4 + $0x5] sm:$0x1]
      %v255 = vld [vmem:[%s1] sm:$0xf]
      %v256 = vld [vmem:[%s1 + $0x4] sm:$0xf]
      %v257 = vld [vmem:[%s1 + $0x8] sm:$0xf]
      %v258 = vld [vmem:[%s1 + $0xc] sm:$0xf]
      %v259 = vperm.slane %v249, 0
      %v264 = vunpack.c.l.b16 %v255
      %v265 = vunpack.c.l.b16 %v256
      %v266 = vunpack.c.l.b16 %v257
      %v267 = vunpack.c.l.b16 %v258
      %v268 = vpack.c.b16 %v265, %v264
      %v269 = vpack.c.b16 %v267, %v266
      %vm272 = vcmask 261120
      %v274 = vsel %vm272, %v248, 0
      %276 = vmatpush.bf16.msra.mxu0 0
      %277 = vmatpush.bf16.msra.mxu0 0
      %278 = vmatpush.bf16.msra.mxu0 0
      %279 = vmatpush.bf16.msra.mxu0 0
      %280 = vmatpush.bf16.msra.mxu0 0
      %281 = vmatpush.bf16.msra.mxu0 0
      %282 = vmatpush.bf16.msra.mxu0 %v269
      %283 = vmatpush.bf16.msra.mxu0 %v268
      %284 = vmatmul.bf16.gmra.mxu0 %v274
      %v285 = vpop.f32.mrf.mxu0
      %v286 = vadd.f32 %v259, %v285
      %v287 = vpop.f32.mrf.mxu0
      %288 = vdwg.mxu0
      %289 = vadd.xlane.f32.xlu0 %v286
      %v290 = vpop.xlane.xlu0 %289
      %v291 = vrcp.pop 128.0
      %v292 = vmul.f32 128.0, %v291
      %v293 = vsub.f32 1.0, %v292
      %v294 = vmul.f32 %v291, %v293
      %v295 = vadd.f32 %v291, %v294
      %vm296 = vweird.f32 %v291
      %v297 = vsel %vm296, %v291, %v295
      %v298 = vmul.f32 %v290, %v297
      %v299 = vsub.f32 %v286, %v298
      %v300 = vmul.f32 %v299, %v299
      %301 = vadd.xlane.f32.xlu0 %v300
      %v302 = vpop.xlane.xlu0 %301
      %v303 = vmul.f32 %v302, %v297
      %v304 = vadd.f32 %v303, 1e-05
      %v305 = vrsqrt.pop %v304
      %v306 = vmul.f32 %v305, %v304
      %v307 = vmul.f32 %v306, %v305
      %v308 = vmul.f32 0.5, %v307
      %v309 = vsub.f32 1.5, %v308
      %v310 = vmul.f32 %v305, %v309
      %vm311 = vweird.f32 %v304
      %vm312 = vweird.f32 %v305
      %vm313 = vmor %vm311, %vm312
      %v314 = vsel %vm313, %v305, %v310
      %v315 = vmul.f32 %v299, %v314
      %v316 = vperm.slane %v250, 0
      %v317 = vmul.f32 %v315, %v316
      %v318 = vperm.slane %v251, 0
      %v319 = vadd.f32 %v317, %v318
      %v320 = vmul.f32 %v319, 0.5
      %v321 = vmul.f32 %v319, 0.70710677
      %v322 = vmul.f32 %v321, %v321
      %v323 = vmin.f32 16.0, %v322
      %v324 = vmul.f32 %v323, 2.1237322e-06
      %v325 = vadd.f32 %v324, 0.00028619796
      %v326 = vmul.f32 %v323, %v325
      %v327 = vadd.f32 %v326, 0.0036580483
      %v328 = vmul.f32 %v323, %v327
      %v329 = vadd.f32 %v328, 0.05243302
      %v330 = vmul.f32 %v323, %v329
      %v331 = vadd.f32 %v330, 0.18741608
      %v332 = vmul.f32 %v323, %v331
      %v333 = vadd.f32 %v332, 1.1283791
      %v334 = vmul.f32 %v321, %v333
      %v335 = vmul.f32 %v323, 3.8918573e-05
      %v336 = vadd.f32 %v335, 0.001143296
      %v337 = vmul.f32 %v323, %v336
      %v338 = vadd.f32 %v337, 0.014752088
      %v339 = vmul.f32 %v323, %v338
      %v340 = vadd.f32 %v339, 0.112945676
      %v341 = vmul.f32 %v323, %v340
      %v342 = vadd.f32 %v341, 0.4994258
      %v343 = vmul.f32 %v323, %v342
      %v344 = vadd.f32 %v343, 1.0
      %v345 = vrcp.pop %v344
      %v346 = vmul.f32 %v344, %v345
      %v347 = vsub.f32 1.0, %v346
      %v348 = vmul.f32 %v345, %v347
      %v349 = vadd.f32 %v345, %v348
      %vm350 = vweird.f32 %v344
      %vm351 = vweird.f32 %v345
      %vm352 = vmor %vm350, %vm351
      %v353 = vsel %vm352, %v345, %v349
      %v354 = vand.u32 2147483647, %v344
      %vm355 = vcmp.eq.f32.partialorder %v354, 8.507059e+37
      %v356 = vand.u32 %v344, 2147483648
      %v357 = vor.u32 1.1754944e-38, %v356
      %v358 = vsel %vm355, %v357, %v353
      %v359 = vmul.f32 %v334, %v358
      %v360 = vmin.f32 %v359, 1.0
      %v361 = vmax.f32 %v360, -1.0
      %v362 = vadd.f32 %v361, 1.0
      %v363 = vmul.f32 %v320, %v362
      %v364 = vpack.c.bf16 %v363, %v363
      %v365 = vld [vmem:[%s2] sm:$0xf]
      %v366 = vld [vmem:[%s2 + $0x4] sm:$0xf]
      %v367 = vld [vmem:[%s2 + $0x8] sm:$0xf]
      %v368 = vld [vmem:[%s2 + $0xc] sm:$0xf]
      %v369 = vld [vmem:[%s2 + $0x10] sm:$0xf]
      %v370 = vld [vmem:[%s2 + $0x14] sm:$0xf]
      %v371 = vld [vmem:[%s2 + $0x18] sm:$0xf]
      %v372 = vld [vmem:[%s2 + $0x1c] sm:$0xf]
      %v373 = vld [vmem:[%s2 + $0x20] sm:$0xf]
      %v374 = vld [vmem:[%s2 + $0x24] sm:$0xf]
      %v375 = vld [vmem:[%s2 + $0x28] sm:$0xf]
      %v376 = vld [vmem:[%s2 + $0x2c] sm:$0xf]
      %v377 = vld [vmem:[%s2 + $0x30] sm:$0xf]
      %v378 = vld [vmem:[%s2 + $0x34] sm:$0xf]
      %v379 = vld [vmem:[%s2 + $0x38] sm:$0xf]
      %v380 = vld [vmem:[%s2 + $0x3c] sm:$0xf]
      %v381 = vperm.slane %v252, 0
      %v398 = vunpack.c.l.b16 %v365
      %v399 = vunpack.c.l.b16 %v366
      %v400 = vunpack.c.l.b16 %v367
      %v401 = vunpack.c.l.b16 %v368
      %v402 = vunpack.c.l.b16 %v369
      %v403 = vunpack.c.l.b16 %v370
      %v404 = vunpack.c.l.b16 %v371
      %v405 = vunpack.c.l.b16 %v372
      %v406 = vunpack.c.l.b16 %v373
      %v407 = vunpack.c.l.b16 %v374
      %v408 = vunpack.c.l.b16 %v375
      %v409 = vunpack.c.l.b16 %v376
      %v410 = vunpack.c.l.b16 %v377
      %v411 = vunpack.c.l.b16 %v378
      %v412 = vunpack.c.l.b16 %v379
      %v413 = vunpack.c.l.b16 %v380
      %v414 = vpack.c.b16 %v399, %v398
      %v415 = vpack.c.b16 %v401, %v400
      %v416 = vpack.c.b16 %v403, %v402
      %v417 = vpack.c.b16 %v405, %v404
      %v418 = vpack.c.b16 %v407, %v406
      %v419 = vpack.c.b16 %v409, %v408
      %v420 = vpack.c.b16 %v411, %v410
      %v421 = vpack.c.b16 %v413, %v412
      %430 = vmatpush.bf16.msra.mxu0 %v421
      %431 = vmatpush.bf16.msra.mxu0 %v420
      %432 = vmatpush.bf16.msra.mxu0 %v419
      %433 = vmatpush.bf16.msra.mxu0 %v418
      %434 = vmatpush.bf16.msra.mxu0 %v417
      %435 = vmatpush.bf16.msra.mxu0 %v416
      %436 = vmatpush.bf16.msra.mxu0 %v415
      %437 = vmatpush.bf16.msra.mxu0 %v414
      %438 = vmatmul.bf16.gmra.mxu0 %v364
      %v439 = vpop.f32.mrf.mxu0
      %v440 = vadd.f32 %v381, %v439
      %v441 = vpop.f32.mrf.mxu0
      %442 = vdwg.mxu0
      %443 = vadd.xlane.f32.xlu0 %v440
      %v444 = vpop.xlane.xlu0 %443
      %v445 = vmul.f32 %v444, %v297
      %v446 = vsub.f32 %v440, %v445
      %v447 = vmul.f32 %v446, %v446
      %448 = vadd.xlane.f32.xlu0 %v447
      %v449 = vpop.xlane.xlu0 %448
      %v450 = vmul.f32 %v449, %v297
      %v451 = vadd.f32 %v450, 1e-05
      %v452 = vrsqrt.pop %v451
      %v453 = vmul.f32 %v452, %v451
      %v454 = vmul.f32 %v453, %v452
      %v455 = vmul.f32 0.5, %v454
      %v456 = vsub.f32 1.5, %v455
      %v457 = vmul.f32 %v452, %v456
      %vm458 = vweird.f32 %v451
      %vm459 = vweird.f32 %v452
      %vm460 = vmor %vm458, %vm459
      %v461 = vsel %vm460, %v452, %v457
      %v462 = vmul.f32 %v446, %v461
      %v463 = vperm.slane %v253, 0
      %v464 = vmul.f32 %v462, %v463
      %v465 = vperm.slane %v254, 0
      %v466 = vadd.f32 %v464, %v465
      %v467 = vmul.f32 %v466, 0.5
      %v468 = vmul.f32 %v466, 0.70710677
      %v469 = vmul.f32 %v468, %v468
      %v470 = vmin.f32 16.0, %v469
      %v471 = vmul.f32 %v470, 2.1237322e-06
      %v472 = vadd.f32 %v471, 0.00028619796
      %v473 = vmul.f32 %v470, %v472
      %v474 = vadd.f32 %v473, 0.0036580483
      %v475 = vmul.f32 %v470, %v474
      %v476 = vadd.f32 %v475, 0.05243302
      %v477 = vmul.f32 %v470, %v476
      %v478 = vadd.f32 %v477, 0.18741608
      %v479 = vmul.f32 %v470, %v478
      %v480 = vadd.f32 %v479, 1.1283791
      %v481 = vmul.f32 %v468, %v480
      %v482 = vmul.f32 %v470, 3.8918573e-05
      %v483 = vadd.f32 %v482, 0.001143296
      %v484 = vmul.f32 %v470, %v483
      %v485 = vadd.f32 %v484, 0.014752088
      %v486 = vmul.f32 %v470, %v485
      %v487 = vadd.f32 %v486, 0.112945676
      %v488 = vmul.f32 %v470, %v487
      %v489 = vadd.f32 %v488, 0.4994258
      %v490 = vmul.f32 %v470, %v489
      %v491 = vadd.f32 %v490, 1.0
      %v492 = vrcp.pop %v491
      %v493 = vmul.f32 %v491, %v492
      %v494 = vsub.f32 1.0, %v493
      %v495 = vmul.f32 %v492, %v494
      %v496 = vadd.f32 %v492, %v495
      %vm497 = vweird.f32 %v491
      %vm498 = vweird.f32 %v492
      %vm499 = vmor %vm497, %vm498
      %v500 = vsel %vm499, %v492, %v496
      %v501 = vand.u32 2147483647, %v491
      %vm502 = vcmp.eq.f32.partialorder %v501, 8.507059e+37
      %v503 = vand.u32 %v491, 2147483648
      %v504 = vor.u32 1.1754944e-38, %v503
      %v505 = vsel %vm502, %v504, %v500
      %v506 = vmul.f32 %v481, %v505
      %v507 = vmin.f32 %v506, 1.0
      %v508 = vmax.f32 %v507, -1.0
      %v509 = vadd.f32 %v508, 1.0
      %v510 = vmul.f32 %v467, %v509
      %v511 = vpack.c.bf16 %v510, %v510
      %v512 = vld [vmem:[%s3] sm:$0xf]
      %v513 = vld [vmem:[%s3 + $0x4] sm:$0xf]
      %v514 = vld [vmem:[%s3 + $0x8] sm:$0xf]
      %v515 = vld [vmem:[%s3 + $0xc] sm:$0xf]
      %v516 = vld [vmem:[%s3 + $0x10] sm:$0xf]
      %v517 = vld [vmem:[%s3 + $0x14] sm:$0xf]
      %v518 = vld [vmem:[%s3 + $0x18] sm:$0xf]
      %v519 = vld [vmem:[%s3 + $0x1c] sm:$0xf]
      %v520 = vld [vmem:[%s3 + $0x20] sm:$0xf]
      %v521 = vld [vmem:[%s3 + $0x24] sm:$0xf]
      %v522 = vld [vmem:[%s3 + $0x28] sm:$0xf]
      %v523 = vld [vmem:[%s3 + $0x2c] sm:$0xf]
      %v524 = vld [vmem:[%s3 + $0x30] sm:$0xf]
      %v525 = vld [vmem:[%s3 + $0x34] sm:$0xf]
      %v526 = vld [vmem:[%s3 + $0x38] sm:$0xf]
      %v527 = vld [vmem:[%s3 + $0x3c] sm:$0xf]
      %v528 = vld [vmem:[%s5] sm:$0x1]
      %v530 = vperm.slane %v528, 0
      %v548 = vunpack.c.l.b16 %v512
      %v549 = vunpack.c.l.b16 %v513
      %v550 = vunpack.c.l.b16 %v514
      %v551 = vunpack.c.l.b16 %v515
      %v552 = vunpack.c.l.b16 %v516
      %v553 = vunpack.c.l.b16 %v517
      %v554 = vunpack.c.l.b16 %v518
      %v555 = vunpack.c.l.b16 %v519
      %v556 = vunpack.c.l.b16 %v520
      %v557 = vunpack.c.l.b16 %v521
      %v558 = vunpack.c.l.b16 %v522
      %v559 = vunpack.c.l.b16 %v523
      %v560 = vunpack.c.l.b16 %v524
      %v561 = vunpack.c.l.b16 %v525
      %v562 = vunpack.c.l.b16 %v526
      %v563 = vunpack.c.l.b16 %v527
      %v564 = vpack.c.b16 %v549, %v548
      %v565 = vpack.c.b16 %v551, %v550
      %v566 = vpack.c.b16 %v553, %v552
      %v567 = vpack.c.b16 %v555, %v554
      %v568 = vpack.c.b16 %v557, %v556
      %v569 = vpack.c.b16 %v559, %v558
      %v570 = vpack.c.b16 %v561, %v560
      %v571 = vpack.c.b16 %v563, %v562
      %580 = vmatpush.bf16.msra.mxu0 %v571
      %581 = vmatpush.bf16.msra.mxu0 %v570
      %582 = vmatpush.bf16.msra.mxu0 %v569
      %583 = vmatpush.bf16.msra.mxu0 %v568
      %584 = vmatpush.bf16.msra.mxu0 %v567
      %585 = vmatpush.bf16.msra.mxu0 %v566
      %586 = vmatpush.bf16.msra.mxu0 %v565
      %587 = vmatpush.bf16.msra.mxu0 %v564
      %588 = vmatmul.bf16.gmra.mxu0 %v511
      %v589 = vpop.f32.mrf.mxu0
      %v590 = vadd.f32 %v530, %v589
      %v591 = vpop.f32.mrf.mxu0
      %592 = vdwg.mxu0
      %v593 = vlaneseq
      %v594 = vand.u32 %v593, 127
      %vm595 = vcmp.ge.s32.totalorder %v594, 5
      %vm596 = vcmp.lt.s32.totalorder %v594, 7
      %vm597 = vmand %vm595, %vm596
      %v598 = vsel %vm597, %v590, 0.0
      %599 = vadd.xlane.f32.xlu0 %v598
      %v600 = vpop.xlane.xlu0 %599
      %v601 = vmul.f32 %v600, 0.5
      %v602 = vsub.f32 %v590, %v601
      %v603 = vsel %vm597, %v602, 0.0
      %v604 = vmul.f32 %v603, %v603
      %605 = vadd.xlane.f32.xlu0 %v604
      %v606 = vpop.xlane.xlu0 %605
      %v607 = vrsqrt.pop %v606
      %v608 = vmul.f32 %v607, %v606
      %v609 = vmul.f32 %v608, %v607
      %v610 = vmul.f32 0.5, %v609
      %v611 = vsub.f32 1.5, %v610
      %v612 = vmul.f32 %v607, %v611
      %v613 = vmul.f32 %v606, %v612
      %vm614 = vcmp.eq.f32.partialorder %v606, inf
      %v615 = vsel %vm614, %v606, %v613
      %vm616 = vcmp.eq.f32.partialorder %v606, 0.0
      %v617 = vand.u32 %v606, 2147483648
      %v618 = vsel %vm616, %v617, %v615
      %vm619 = vcmp.lt.s32.totalorder %v594, 5
      %v620 = vmax.f32 %v590, -10.0
      %v621 = vmin.f32 %v620, 10.0
      %v622 = vsel %vm619, %v621, 0.0
      %vm623 = vcmp.eq.s32.totalorder %v594, 5
      %v624 = vsel %vm623, %v601, %v622
      %vm625 = vcmp.eq.s32.totalorder %v594, 6
      %v626 = vsel %vm625, %v618, %v624
      %627 = vst [vmem:[%s246] sm:$0xff] %v626
      %p628 = scmp.lt.s32.totalorder %s17, 1
      %s629 = scalar_select %p628, %s17, 1
      %s630 = smul.addr %s629, 8
      %s631 = scalar_lea.vmem %s6, %s630
      // Predicated region
      $region45: #{policy_critic_forward.1} parent=43 // pred_check
        %p632 = pneg %p166
      $region46: #{policy_critic_forward.1} parent=43 // pred_check_branch
        %634 = sbr.rel (%p632) target = $region48
      $region47: #{policy_critic_forward.1} parent=43 // pred_region
        _
      $region48: #{policy_critic_forward.1} parent=43 // pred_fallthru
        _
    $region44: #{policy_critic_forward.1} parent=5 // pred_fallthru
      _
    %p635 = scmp.le.s32.totalorder 2, %s12
    // Predicated region
    $region49: #{policy_critic_forward.1} parent=5 // pred_check
      %p636 = pneg %p635
    $region50: #{policy_critic_forward.1} parent=5 // pred_check_branch
      %638 = sbr.rel (%p636) target = $region52
    $region51: #{policy_critic_forward.1} parent=5 // pred_region
      %s639 = ssub.s32 %s12, 2
      // Predicated region
      $region53: #{policy_critic_forward.1} parent=51 // pred_check
        %p640 = pneg %p172
      $region54: #{policy_critic_forward.1} parent=51 // pred_check_branch
        %642 = sbr.rel (%p640) target = $region56
      $region55: #{policy_critic_forward.1} parent=51 // pred_region
        %p643 = scmp.lt.s32.totalorder %s18, 1
        %s644 = scalar_select %p643, %s18, 1
        %s645 = smul.addr %s644, 8
        %s646 = scalar_lea.vmem %s6, %s645
      $region56: #{policy_critic_forward.1} parent=51 // pred_fallthru
        _
    $region52: #{policy_critic_forward.1} parent=5 // pred_fallthru
      _
  $region6: #{policy_critic_forward.1} parent=0 // loop_footer
    %s16 = sadd.s32 1, %s12
  $region7: #{policy_critic_forward.1} parent=0 // loop_footer_branch
    %11 = sbr.rel target = $region3
  $region8: #{policy_critic_forward.1} parent=0 // loop_exit
    _

</llo_original>
